<compile_context>
chip_gen: v5e
topology: v5e:2x2
jax: 0.10.0
libtpu: 0.0.40
codegen_flags: <defaults>
</compile_context>

<pallas_src>
import functools

import jax
import jax.numpy as jnp
from jax import lax
from jax.experimental import pallas as pl
from jax.experimental.pallas import tpu as pltpu

_LANES = 128
_SUB = 8            # per-program partial sums are one (8,128) f32 vreg
_NEG_FILL = -1e4    # sigmoid(-1e4) == 0 under the numerically-stable lowering


def _round_up(x, m):
    return ((x + m - 1) // m) * m


def _dice_kernel(pred_ref, tgt_ref, num_ref, den_ref, *,
                 p, rows, valid_rows, ragged):
    """Accumulate (8,128) partials of sigmoid(pred)*tgt and pred^p + tgt^p."""
    j = pl.program_id(1)   # chunk index along the reduction (row) axis

    @pl.when(j == 0)
    def _():
        num_ref[...] = jnp.zeros_like(num_ref)
        den_ref[...] = jnp.zeros_like(den_ref)

    pr = jax.nn.sigmoid(pred_ref[...].astype(jnp.float32))   # (rows, 128), EUP
    tg = tgt_ref[...].astype(jnp.float32)

    def accumulate(pr, tg):
        # Denominator powers stay on the VPU for integral p; general jnp.power
        # (exp/log on the single EUP) only for fractional p.
        if p == 2:
            pw = pr * pr + tg * tg
        elif float(p).is_integer():
            pw = lax.integer_pow(pr, int(p)) + lax.integer_pow(tg, int(p))
        else:
            pw = jnp.power(pr, p) + jnp.power(tg, p)
        # Fold the (rows,128) chunk to one (8,128) vreg with pure VPU adds
        # (sublane-group reshape is (8,128)-tile aligned -> no XLU, no copy),
        # then one tiny read-modify-write of the resident output accumulator.
        num_ref[...] += jnp.sum((pr * tg).reshape(rows // _SUB, _SUB, _LANES),
                                axis=0)
        den_ref[...] += jnp.sum(pw.reshape(rows // _SUB, _SUB, _LANES), axis=0)

    if ragged:
        last = pl.num_programs(1) - 1

        @pl.when(j != last)
        def _():
            accumulate(pr, tg)          # steady state: no iota, no selects

        @pl.when(j == last)
        def _():
            # Only the final chunk can overhang the row extent; mask the
            # undefined overhang rows BEFORE pow/mul so garbage (possibly NaN)
            # never reaches the accumulators.
            row = lax.broadcasted_iota(jnp.int32, (rows, _LANES), 0) + j * rows
            valid = row < valid_rows
            accumulate(jnp.where(valid, pr, 0.0), jnp.where(valid, tg, 0.0))
    else:
        accumulate(pr, tg)


def binary_dice_loss(predict, target, smooth=1.0, p=2, reduction="mean",
                     block_rows=4096, num_splits=None):
    """Pallas TPU implementation of BinaryDiceLoss.forward."""
    assert predict.shape[0] == target.shape[0], \
        "predict & target batch size don't match"
    n = predict.shape[0]
    pred2d = predict.reshape(n, -1)
    tgt2d = target.reshape(n, -1)
    l = pred2d.shape[1]
    lc = pl.cdiv(l, _LANES)               # 128-lane rows per batch element

    # Reduction-axis split so a small batch still fills both TensorCores on
    # multi-core parts (v7x). Only applied when it costs no extra copies.
    if num_splits is None:
        num_splits = 2 if n == 1 else 1
    num_splits = max(1, min(num_splits, lc // _SUB if lc >= _SUB else 1))

    row_align = _SUB * num_splits
    must_copy = (lc * _LANES != l)        # L % 128 tail -> reshape needs a pad
    if not must_copy and lc % row_align != 0:
        if lc % _SUB != 0:
            must_copy = True              # pad rows to a multiple of 8
        else:
            num_splits = 1                # don't pay a whole-array copy to split
            row_align = _SUB
    lc_p = _round_up(lc, row_align) if must_copy else lc
    if must_copy:
        # TODO(synk): this pad copies the arrays once in XLA; unavoidable when
        # the flattened length is not already a multiple of 128 (the [*,lc,128]
        # view needs contiguous 128-lane rows). Predict pad uses a large
        # negative fill so sigmoid()==0 and padded elements contribute nothing.
        pad = lc_p * _LANES - l
        pred2d = jnp.pad(pred2d, ((0, 0), (0, pad)), constant_values=_NEG_FILL)
        tgt2d = jnp.pad(tgt2d, ((0, 0), (0, pad)), constant_values=0)

    g = n * num_splits
    r = lc_p // num_splits                # rows per program; multiple of 8
    pred3d = pred2d.reshape(g, r, _LANES)  # free reshape (row-major view)
    tgt3d = tgt2d.reshape(g, r, _LANES)

    # Block rows: either the full extent (always tiling-legal) or a multiple
    # of 32 (legal sublane tiling for f32/bf16/f16/int8 alike).
    max_rows = max(32, (block_rows // 32) * 32)
    if r <= max_rows:
        rows, num_chunks, ragged = r, 1, False
    else:
        rows = max_rows
        num_chunks = pl.cdiv(r, rows)
        ragged = (num_chunks * rows != r)

    kernel = functools.partial(_dice_kernel, p=p, rows=rows,
                               valid_rows=r, ragged=ragged)

    # VMEM: 2 inputs x 2 pipeline buffers + f32 elementwise temporaries + slack.
    in_block = rows * _LANES * (pred3d.dtype.itemsize + tgt3d.dtype.itemsize)
    tmp = 6 * rows * _LANES * 4
    vmem_limit = int(min(max(2 * in_block + tmp + (2 << 20), 8 << 20), 96 << 20))

    out_sds = jax.ShapeDtypeStruct((g, _SUB, _LANES), jnp.float32)
    num_part, den_part = pl.pallas_call(
        kernel,
        out_shape=(out_sds, out_sds),
        grid_spec=pltpu.PrefetchScalarGridSpec(
            num_scalar_prefetch=0,
            grid=(g, num_chunks),          # (batch x splits) parallel, chunks reduce
            in_specs=[
                pl.BlockSpec((None, rows, _LANES), lambda i, j: (i, j, 0)),
                pl.BlockSpec((None, rows, _LANES), lambda i, j: (i, j, 0)),
            ],
            out_specs=[
                pl.BlockSpec((None, _SUB, _LANES), lambda i, j: (i, 0, 0)),
                pl.BlockSpec((None, _SUB, _LANES), lambda i, j: (i, 0, 0)),
            ],
        ),
        compiler_params=pltpu.CompilerParams(
            dimension_semantics=("parallel", "arbitrary"),
            vmem_limit_bytes=vmem_limit),
    )(pred3d, tgt3d)

    # Tiny finalize (a few KB) in XLA: fold the per-program (8,128) partials,
    # add smooth, divide; then the torch reduction over the batch.
    num = num_part.reshape(n, -1).sum(axis=1) + smooth
    den = den_part.reshape(n, -1).sum(axis=1) + smooth
    loss = 1.0 - num / den                # [N,]

    if reduction == "mean":
        return loss.mean()
    elif reduction == "sum":
        return loss.sum()
    elif reduction == "none":
        return loss
    else:
        raise Exception("Unexpected reduction {}".format(reduction))


def _reference(predict, target, smooth=1.0, p=2, reduction="mean"):
    n = predict.shape[0]
    pr = jax.nn.sigmoid(predict.reshape(n, -1).astype(jnp.float32))
    tg = target.reshape(n, -1).astype(jnp.float32)
    num = jnp.sum(pr * tg, axis=1) + smooth
    den = jnp.sum(pr ** p + tg ** p, axis=1) + smooth
    loss = 1.0 - num / den
    if reduction == "mean":
        return loss.mean()
    elif reduction == "sum":
        return loss.sum()
    return loss


if __name__ == "__main__":
    key = jax.random.PRNGKey(0)
    ks = jax.random.split(key, 10)

    def check(name, loss, ref):
        assert jnp.allclose(loss, ref, atol=1e-5, rtol=1e-5), (name, loss, ref)

    # Case 1: [2, 4, 16, 16] logits + binary mask, mean (single chunk, no pad).
    p1 = jax.random.normal(ks[0], (2, 4, 16, 16), dtype=jnp.float32)
    t1 = (jax.random.uniform(ks[1], (2, 4, 16, 16)) > 0.5).astype(jnp.float32)
    l1 = jax.block_until_ready(binary_dice_loss(p1, t1, 1.0, 2, "mean"))
    check("case1", l1, _reference(p1, t1, 1.0, 2, "mean"))

    # Case 2: multi-chunk reduction with a ragged, in-kernel-masked last chunk.
    p2 = jax.random.normal(ks[2], (2, 5, 32, 32), dtype=jnp.float32)
    t2 = (jax.random.uniform(ks[3], (2, 5, 32, 32)) > 0.5).astype(jnp.float32)
    l2 = jax.block_until_ready(
        binary_dice_loss(p2, t2, 1.0, 2, "none", block_rows=32))
    check("case2", l2, _reference(p2, t2, 1.0, 2, "none"))

    # Case 3: batch 1 -> reduction axis split across two parallel programs.
    p3 = jax.random.normal(ks[4], (1, 4, 16, 32), dtype=jnp.float32)
    t3 = (jax.random.uniform(ks[5], (1, 4, 16, 32)) > 0.5).astype(jnp.float32)
    l3 = jax.block_until_ready(binary_dice_loss(p3, t3, 1.0, 2, "sum"))
    check("case3", l3, _reference(p3, t3, 1.0, 2, "sum"))

    # Case 4: L % 128 != 0 -> column/row pad with sigmoid-killing fill.
    p4 = jax.random.normal(ks[6], (2, 3, 10, 10), dtype=jnp.float32)
    t4 = (jax.random.uniform(ks[7], (2, 3, 10, 10)) > 0.5).astype(jnp.float32)
    l4 = jax.block_until_ready(binary_dice_loss(p4, t4, 1.0, 2, "mean"))
    check("case4", l4, _reference(p4, t4, 1.0, 2, "mean"))

    # Case 5: bf16 predict (halved HBM traffic), f32 target, 'none'.
    p5 = jax.random.normal(ks[8], (2, 4, 32, 16), dtype=jnp.bfloat16)
    t5 = (jax.random.uniform(ks[9], (2, 4, 32, 16)) > 0.5).astype(jnp.float32)
    l5 = jax.block_until_ready(binary_dice_loss(p5, t5, 1.0, 2, "none"))
    check("case5", l5, _reference(p5, t5, 1.0, 2, "none"))

    print("KERNEL_OK")
</pallas_src>

<mosaic_0001>
module attributes {stable_mosaic.version = 11 : i64} {
  func.func @_dice_kernel(%arg0: i32, %arg1: i32, %arg2: memref<1x8x128xf32, #tpu.memory_space<vmem>>, %arg3: memref<1x8x128xf32, #tpu.memory_space<vmem>>, %arg4: memref<1x8x128xf32, #tpu.memory_space<vmem>>, %arg5: memref<1x8x128xf32, #tpu.memory_space<vmem>>) attributes {dimension_semantics = [#tpu.dimension_semantics<parallel>, #tpu.dimension_semantics<arbitrary>], iteration_bounds = array<i64: 2, 1>, scalar_prefetch = 0 : i64, scratch_operands = 0 : i64, tpu.core_type = #tpu.core_type<tc>, window_params = [{transform_indices = @transform_0, window_bounds = array<i64: 1, 8, 128>}, {transform_indices = @transform_1, window_bounds = array<i64: 1, 8, 128>}, {transform_indices = @transform_2, window_bounds = array<i64: 1, 8, 128>}, {transform_indices = @transform_3, window_bounds = array<i64: 1, 8, 128>}]} {
    %c0_i32 = arith.constant 0 : i32
    %0 = arith.cmpi eq, %arg1, %c0_i32 : i32
    %1 = arith.extui %0 : i1 to i32
    %c0_i32_0 = arith.constant 0 : i32
    %2 = arith.cmpi ne, %1, %c0_i32_0 : i32
    scf.if %2 {
      %cst_20 = arith.constant 0.000000e+00 : f32
      %32 = vector.broadcast %cst_20 : f32 to vector<8x128xf32>
      %c0_21 = arith.constant 0 : index
      %c0_22 = arith.constant 0 : index
      %c0_23 = arith.constant 0 : index
      %33 = vector.load %arg4[%c0_21, %c0_22, %c0_23] : memref<1x8x128xf32, #tpu.memory_space<vmem>>, vector<1x8x128xf32>
      %34 = vector.shape_cast %33 : vector<1x8x128xf32> to vector<8x128xf32>
      %35 = vector.shape_cast %32 : vector<8x128xf32> to vector<1x8x128xf32>
      tpu.vector_store %arg4[%c0_21, %c0_22, %c0_23], %35 {strides = array<i32>} : memref<1x8x128xf32, #tpu.memory_space<vmem>>, vector<1x8x128xf32>,
      %cst_24 = arith.constant 0.000000e+00 : f32
      %36 = vector.broadcast %cst_24 : f32 to vector<8x128xf32>
      %c0_25 = arith.constant 0 : index
      %c0_26 = arith.constant 0 : index
      %c0_27 = arith.constant 0 : index
      %37 = vector.load %arg5[%c0_25, %c0_26, %c0_27] : memref<1x8x128xf32, #tpu.memory_space<vmem>>, vector<1x8x128xf32>
      %38 = vector.shape_cast %37 : vector<1x8x128xf32> to vector<8x128xf32>
      %39 = vector.shape_cast %36 : vector<8x128xf32> to vector<1x8x128xf32>
      tpu.vector_store %arg5[%c0_25, %c0_26, %c0_27], %39 {strides = array<i32>} : memref<1x8x128xf32, #tpu.memory_space<vmem>>, vector<1x8x128xf32>,
    } else {
    }
    %c0 = arith.constant 0 : index
    %c0_1 = arith.constant 0 : index
    %c0_2 = arith.constant 0 : index
    %3 = vector.load %arg2[%c0, %c0_1, %c0_2] : memref<1x8x128xf32, #tpu.memory_space<vmem>>, vector<1x8x128xf32>
    %4 = vector.shape_cast %3 : vector<1x8x128xf32> to vector<8x128xf32>
    %5 = arith.negf %4 : vector<8x128xf32>
    %6 = math.exp %5 : vector<8x128xf32>
    %cst = arith.constant 1.000000e+00 : f32
    %7 = vector.broadcast %cst : f32 to vector<8x128xf32>
    %8 = arith.addf %7, %6 : vector<8x128xf32>
    %9 = arith.divf %7, %8 : vector<8x128xf32>
    %c0_3 = arith.constant 0 : index
    %c0_4 = arith.constant 0 : index
    %c0_5 = arith.constant 0 : index
    %10 = vector.load %arg3[%c0_3, %c0_4, %c0_5] : memref<1x8x128xf32, #tpu.memory_space<vmem>>, vector<1x8x128xf32>
    %11 = vector.shape_cast %10 : vector<1x8x128xf32> to vector<8x128xf32>
    %12 = arith.mulf %9, %9 : vector<8x128xf32>
    %13 = arith.mulf %11, %11 : vector<8x128xf32>
    %14 = arith.addf %12, %13 : vector<8x128xf32>
    %c0_6 = arith.constant 0 : index
    %c0_7 = arith.constant 0 : index
    %c0_8 = arith.constant 0 : index
    %15 = vector.load %arg4[%c0_6, %c0_7, %c0_8] : memref<1x8x128xf32, #tpu.memory_space<vmem>>, vector<1x8x128xf32>
    %16 = vector.shape_cast %15 : vector<1x8x128xf32> to vector<8x128xf32>
    %17 = arith.mulf %9, %11 : vector<8x128xf32>
    %18 = vector.shape_cast %17 : vector<8x128xf32> to vector<1x8x128xf32>
    %cst_9 = arith.constant dense<0.000000e+00> : vector<8x128xf32>
    %19 = vector.multi_reduction <add>, %18, %cst_9 [0] : vector<1x8x128xf32> to vector<8x128xf32>
    %20 = arith.addf %16, %19 : vector<8x128xf32>
    %c0_10 = arith.constant 0 : index
    %c0_11 = arith.constant 0 : index
    %c0_12 = arith.constant 0 : index
    %21 = vector.load %arg4[%c0_10, %c0_11, %c0_12] : memref<1x8x128xf32, #tpu.memory_space<vmem>>, vector<1x8x128xf32>
    %22 = vector.shape_cast %21 : vector<1x8x128xf32> to vector<8x128xf32>
    %23 = vector.shape_cast %20 : vector<8x128xf32> to vector<1x8x128xf32>
    tpu.vector_store %arg4[%c0_10, %c0_11, %c0_12], %23 {strides = array<i32>} : memref<1x8x128xf32, #tpu.memory_space<vmem>>, vector<1x8x128xf32>,
    %c0_13 = arith.constant 0 : index
    %c0_14 = arith.constant 0 : index
    %c0_15 = arith.constant 0 : index
    %24 = vector.load %arg5[%c0_13, %c0_14, %c0_15] : memref<1x8x128xf32, #tpu.memory_space<vmem>>, vector<1x8x128xf32>
    %25 = vector.shape_cast %24 : vector<1x8x128xf32> to vector<8x128xf32>
    %26 = vector.shape_cast %14 : vector<8x128xf32> to vector<1x8x128xf32>
    %cst_16 = arith.constant dense<0.000000e+00> : vector<8x128xf32>
    %27 = vector.multi_reduction <add>, %26, %cst_16 [0] : vector<1x8x128xf32> to vector<8x128xf32>
    %28 = arith.addf %25, %27 : vector<8x128xf32>
    %c0_17 = arith.constant 0 : index
    %c0_18 = arith.constant 0 : index
    %c0_19 = arith.constant 0 : index
    %29 = vector.load %arg5[%c0_17, %c0_18, %c0_19] : memref<1x8x128xf32, #tpu.memory_space<vmem>>, vector<1x8x128xf32>
    %30 = vector.shape_cast %29 : vector<1x8x128xf32> to vector<8x128xf32>
    %31 = vector.shape_cast %28 : vector<8x128xf32> to vector<1x8x128xf32>
    tpu.vector_store %arg5[%c0_17, %c0_18, %c0_19], %31 {strides = array<i32>} : memref<1x8x128xf32, #tpu.memory_space<vmem>>, vector<1x8x128xf32>,
    return
  }
  func.func @transform_0(%arg0: i32, %arg1: i32) -> (i32, i32, i32) {
    %c0_i32 = arith.constant 0 : i32
    %c0_i32_0 = arith.constant 0 : i32
    return %arg0, %arg1, %c0_i32 : i32, i32, i32
  }
  func.func @transform_1(%arg0: i32, %arg1: i32) -> (i32, i32, i32) {
    %c0_i32 = arith.constant 0 : i32
    %c0_i32_0 = arith.constant 0 : i32
    return %arg0, %arg1, %c0_i32 : i32, i32, i32
  }
  func.func @transform_2(%arg0: i32, %arg1: i32) -> (i32, i32, i32) {
    %c0_i32 = arith.constant 0 : i32
    %c0_i32_0 = arith.constant 0 : i32
    %c0_i32_1 = arith.constant 0 : i32
    return %arg0, %c0_i32, %c0_i32_0 : i32, i32, i32
  }
  func.func @transform_3(%arg0: i32, %arg1: i32) -> (i32, i32, i32) {
    %c0_i32 = arith.constant 0 : i32
    %c0_i32_0 = arith.constant 0 : i32
    %c0_i32_1 = arith.constant 0 : i32
    return %arg0, %c0_i32, %c0_i32_0 : i32, i32, i32
  }
}

</mosaic_0001>

<llo_original>
// kernel: tpu_custom_call.1
$region0: #{tpu_custom_call.1}
  #allocation0 [shape = 'u32[]', space=smem, size = 0x4, offset = 0x4, fixed_abs, tag = 'smem constant byte address 0x4 - core index']
  #allocation1 [shape = 'u32[72,128]{1,0:T(1,128)}', space=vmem, size = 0x9000, scoped, tag = 'internal scratch']
  %s0 = inlined_call_operand.hbm [shape: f32[2,8,128], index: 0, kind: input, shape index: {}]
  %s1 = inlined_call_operand.hbm [shape: f32[2,8,128], index: 1, kind: input, shape index: {}]
  %s2 = inlined_call_operand.hbm [shape: f32[2,8,128], index: 2, kind: output, shape index: {0}]
  %s3 = inlined_call_operand.hbm [shape: f32[2,8,128], index: 3, kind: output, shape index: {1}]
  %4 = xla_tuple %s2, %s3
  %s5 = sld [smem:[#allocation0]]
  $region61: #{tpu_custom_call.1} parent=0
    _
  %s7 = ssub.s32 1, %s5
  %s8 = scalar_select 0, %s7, %s5
  $region1: #{tpu_custom_call.1} parent=0
    #allocation2 [shape = 'u8[8192]{0}', space=vmem, size = 0x2000, scoped, tag = 'input window, operand 0']
    #allocation3 [shape = 's32[2]{0}', space=sflag, size = 0x8, scoped, tag = 'scoped memory for tpu_custom_call.1']
    #allocation4 [shape = 's32[2]{0}', space=sflag, size = 0x8, scoped, tag = 'scoped memory for tpu_custom_call.1']
    #allocation5 [shape = 'u8[8192]{0}', space=vmem, size = 0x2000, scoped, tag = 'input window, operand 1']
    #allocation6 [shape = 's32[2]{0}', space=sflag, size = 0x8, scoped, tag = 'scoped memory for tpu_custom_call.1']
    #allocation7 [shape = 'u8[8192]{0}', space=vmem, size = 0x2000, scoped, tag = 'output window, operand 0']
    #allocation8 [shape = 'u8[8192]{0}', space=vmem, size = 0x2000, scoped, tag = 'output window, operand 1']
    #allocation9 [shape = 's32[2]{0}', space=sflag, size = 0x8, scoped, tag = 'scoped memory for tpu_custom_call.1']
    %9 = vsyncpa [#allocation3], 0
    %s10 = scalar_lea.sflag [#allocation3], 1
    %11 = vsyncpa %s10, 0
    %12 = vsyncpa [#allocation6], 0
    %s13 = scalar_lea.sflag [#allocation6], 1
    %14 = vsyncpa %s13, 0
    %15 = vsyncpa [#allocation4], 0
    %s16 = scalar_lea.sflag [#allocation4], 1
    %17 = vsyncpa %s16, 0
    %18 = vsyncpa [#allocation9], 0
    %s19 = scalar_lea.sflag [#allocation9], 1
    %20 = vsyncpa %s19, 0
    loop: start=0, step=1, limit=4
    $region2: #{tpu_custom_call.1} parent=1 // loop_pre_header
      _
    $region3: #{tpu_custom_call.1} parent=1 // loop_header
      %s22 = sphi 0, %s26
      %p23 = scmp.ge.s32.totalorder %s22, 4
      %s29 = sphi 0, %s41
      %s30 = sphi 0, %s37
      %s31 = sphi 0, %s29
      %s32 = sphi 0, %s30
      %s33 = sphi 0, %s31
      %s34 = sphi 0, %s32
      %s46 = sphi 0, %s48
      %s49 = sphi 0, %s46
      %s50 = sphi 0, %s49
      %s66 = sphi 0, %s50
      %s74 = sphi 0, %s76
      %s77 = sphi 0, %s74
      %s78 = sphi 0, %s77
      %s94 = sphi 0, %s78
      %s100 = sphi 0, %s102
      %s103 = sphi 0, %s100
      %s104 = sphi 0, %s103
      %s120 = sphi 0, %s104
      %s126 = sphi 0, %s128
      %s129 = sphi 0, %s126
      %s130 = sphi 0, %s129
      %s146 = sphi 0, %s130
    $region4: #{tpu_custom_call.1} parent=1 // loop_header_branch
      %25 = sbr.rel (%p23) target = $region8
    $region5: #{tpu_custom_call.1} parent=1 // loop_body
      %s27 = ssub.s32 %s22, 1
      %s28 = ssub.s32 %s22, 2
      %s35 = sadd.s32 1, %s30
      %p36 = scmp.ge.s32.totalorder %s35, 1
      %s37 = scalar_select %p36, 0, %s35
      %s38 = sadd.s32 1, %s29
      %s39 = scalar_select %p36, %s38, %s29
      %p40 = scmp.ge.s32.totalorder %s39, 2
      %s41 = scalar_select %p40, 0, %s39
      %s42 = ssub.s32 %s29, %s41
      %s43 = ssub.s32 %s30, %s37
      %s44 = sor.u32 %s42, %s43
      %p45 = scmp.eq.s32.totalorder %s44, 0
      %s47 = sadd.s32 %s46, 1
      %s48 = scalar_select %p45, %s46, %s47
      %p51 = pneg %p45
      %p52 = scmp.eq.s32.totalorder %s22, 1
      %p53 = por %p51, %p52
      %p54 = scmp.ne.s32.totalorder %s46, %s49
      %p55 = scmp.eq.s32.totalorder %s22, 0
      %p56 = por %p54, %p55
      %p57 = scmp.ne.s32.totalorder %s46, %s49
      %p58 = scmp.eq.s32.totalorder %s27, 1
      %p59 = por %p57, %p58
      %p60 = scmp.ne.s32.totalorder %s49, %s50
      %p61 = scmp.eq.s32.totalorder %s27, 0
      %p62 = por %p60, %p61
      %p63 = scmp.ne.s32.totalorder %s49, %s50
      %p64 = scmp.eq.s32.totalorder %s28, 1
      %p65 = por %p63, %p64
      %p67 = scmp.ne.s32.totalorder %s50, %s66
      %p68 = scmp.eq.s32.totalorder %s28, 0
      %p69 = por %p67, %p68
      %s70 = ssub.s32 %s29, %s41
      %s71 = ssub.s32 %s30, %s37
      %s72 = sor.u32 %s70, %s71
      %p73 = scmp.eq.s32.totalorder %s72, 0
      %s75 = sadd.s32 %s74, 1
      %s76 = scalar_select %p73, %s74, %s75
      %p79 = pneg %p73
      %p80 = scmp.eq.s32.totalorder %s22, 1
      %p81 = por %p79, %p80
      %p82 = scmp.ne.s32.totalorder %s74, %s77
      %p83 = scmp.eq.s32.totalorder %s22, 0
      %p84 = por %p82, %p83
      %p85 = scmp.ne.s32.totalorder %s74, %s77
      %p86 = scmp.eq.s32.totalorder %s27, 1
      %p87 = por %p85, %p86
      %p88 = scmp.ne.s32.totalorder %s77, %s78
      %p89 = scmp.eq.s32.totalorder %s27, 0
      %p90 = por %p88, %p89
      %p91 = scmp.ne.s32.totalorder %s77, %s78
      %p92 = scmp.eq.s32.totalorder %s28, 1
      %p93 = por %p91, %p92
      %p95 = scmp.ne.s32.totalorder %s78, %s94
      %p96 = scmp.eq.s32.totalorder %s28, 0
      %p97 = por %p95, %p96
      %s98 = ssub.s32 %s29, %s41
      %p99 = scmp.eq.s32.totalorder %s98, 0
      %s101 = sadd.s32 %s100, 1
      %s102 = scalar_select %p99, %s100, %s101
      %p105 = pneg %p99
      %p106 = scmp.eq.s32.totalorder %s22, 1
      %p107 = por %p105, %p106
      %p108 = scmp.ne.s32.totalorder %s100, %s103
      %p109 = scmp.eq.s32.totalorder %s22, 0
      %p110 = por %p108, %p109
      %p111 = scmp.ne.s32.totalorder %s100, %s103
      %p112 = scmp.eq.s32.totalorder %s27, 1
      %p113 = por %p111, %p112
      %p114 = scmp.ne.s32.totalorder %s103, %s104
      %p115 = scmp.eq.s32.totalorder %s27, 0
      %p116 = por %p114, %p115
      %p117 = scmp.ne.s32.totalorder %s103, %s104
      %p118 = scmp.eq.s32.totalorder %s28, 1
      %p119 = por %p117, %p118
      %p121 = scmp.ne.s32.totalorder %s104, %s120
      %p122 = scmp.eq.s32.totalorder %s28, 0
      %p123 = por %p121, %p122
      %s124 = ssub.s32 %s29, %s41
      %p125 = scmp.eq.s32.totalorder %s124, 0
      %s127 = sadd.s32 %s126, 1
      %s128 = scalar_select %p125, %s126, %s127
      %p131 = pneg %p125
      %p132 = scmp.eq.s32.totalorder %s22, 1
      %p133 = por %p131, %p132
      %p134 = scmp.ne.s32.totalorder %s126, %s129
      %p135 = scmp.eq.s32.totalorder %s22, 0
      %p136 = por %p134, %p135
      %p137 = scmp.ne.s32.totalorder %s126, %s129
      %p138 = scmp.eq.s32.totalorder %s27, 1
      %p139 = por %p137, %p138
      %p140 = scmp.ne.s32.totalorder %s129, %s130
      %p141 = scmp.eq.s32.totalorder %s27, 0
      %p142 = por %p140, %p141
      %p143 = scmp.ne.s32.totalorder %s129, %s130
      %p144 = scmp.eq.s32.totalorder %s28, 1
      %p145 = por %p143, %p144
      %p147 = scmp.ne.s32.totalorder %s130, %s146
      %p148 = scmp.eq.s32.totalorder %s28, 0
      %p149 = por %p147, %p148
      %p150 = scmp.le.s32.totalorder 1, %s22
      %p151 = scmp.lt.s32.totalorder %s22, 3
      %p152 = pnand %p150, %p151
      %p153 = pneg %p152
      // Predicated region
      $region9: #{tpu_custom_call.1} parent=5 // pred_check
        _
      $region10: #{tpu_custom_call.1} parent=5 // pred_check_branch
        %155 = sbr.rel (%p152) target = $region12
      $region11: #{tpu_custom_call.1} parent=5 // pred_region
        %s156 = ssub.s32 %s22, 1
      $region12: #{tpu_custom_call.1} parent=5 // pred_fallthru
        _
      %p157 = scmp.lt.s32.totalorder %s22, 2
      // Predicated region
      $region13: #{tpu_custom_call.1} parent=5 // pred_check
        %p158 = pneg %p157
      $region14: #{tpu_custom_call.1} parent=5 // pred_check_branch
        %160 = sbr.rel (%p158) target = $region16
      $region15: #{tpu_custom_call.1} parent=5 // pred_region
        // Predicated region
        $region17: #{tpu_custom_call.1} parent=15 // pred_check
          %p161 = pneg %p56
        $region18: #{tpu_custom_call.1} parent=15 // pred_check_branch
          %163 = sbr.rel (%p161) target = $region20
        $region19: #{tpu_custom_call.1} parent=15 // pred_region
          %s164 = sand.u32 %s46, 1
          %s165 = scalar_lea.sflag [#allocation3], %s164
          %s166 = sand.u32 %s46, 1
          %s167 = smul.addr %s166, 8
          %s168 = scalar_lea.vmem [#allocation2], %s167
          %170 = vsyncadd %s165, 0
          %s171 = sadd.s32 %s30, %s29
          %s172 = smul.addr %s171, 8
          %s173 = scalar_lea.hbm %s0, %s172
          %s175 = sshll.u32 %s173, 4
          %s176 = int_to_ptr.hbm [resolvable:$true] %s175
          %s177 = sshll.u32 %s168, 4
          %s178 = int_to_ptr.vmem [resolvable:$true] %s177
          %180 = dma.hbm_to_vmem [thread:$0]  %s176, 128, %s178, %s165
        $region20: #{tpu_custom_call.1} parent=15 // pred_fallthru
          _
        // Predicated region
        $region21: #{tpu_custom_call.1} parent=15 // pred_check
          %p181 = pneg %p84
        $region22: #{tpu_custom_call.1} parent=15 // pred_check_branch
          %183 = sbr.rel (%p181) target = $region24
        $region23: #{tpu_custom_call.1} parent=15 // pred_region
          %s184 = sand.u32 %s74, 1
          %s185 = scalar_lea.sflag [#allocation6], %s184
          %s186 = sand.u32 %s74, 1
          %s187 = smul.addr %s186, 8
          %s188 = scalar_lea.vmem [#allocation5], %s187
          %190 = vsyncadd %s185, 0
          %s191 = sadd.s32 %s30, %s29
          %s192 = smul.addr %s191, 8
          %s193 = scalar_lea.hbm %s1, %s192
          %s195 = sshll.u32 %s193, 4
          %s196 = int_to_ptr.hbm [resolvable:$true] %s195
          %s197 = sshll.u32 %s188, 4
          %s198 = int_to_ptr.vmem [resolvable:$true] %s197
          %200 = dma.hbm_to_vmem [thread:$0]  %s196, 128, %s198, %s185
        $region24: #{tpu_custom_call.1} parent=15 // pred_fallthru
          _
      $region16: #{tpu_custom_call.1} parent=5 // pred_fallthru
        _
      %p201 = scmp.le.s32.totalorder 1, %s22
      %p202 = scmp.lt.s32.totalorder %s22, 3
      %p203 = pnand %p201, %p202
      %p204 = pneg %p203
      // Predicated region
      $region25: #{tpu_custom_call.1} parent=5 // pred_check
        _
      $region26: #{tpu_custom_call.1} parent=5 // pred_check_branch
        %206 = sbr.rel (%p203) target = $region28
      $region27: #{tpu_custom_call.1} parent=5 // pred_region
        %s207 = ssub.s32 %s22, 1
        %s208 = sand.u32 %s49, 1
        %s209 = scalar_lea.sflag [#allocation3], %s208
        %s210 = sand.u32 %s49, 1
        %s211 = smul.addr %s210, 8
        %s212 = scalar_lea.vmem [#allocation2], %s211
        // Predicated region
        $region29: #{tpu_custom_call.1} parent=27 // pred_check
          %p213 = pneg %p62
        $region30: #{tpu_custom_call.1} parent=27 // pred_check_branch
          %215 = sbr.rel (%p213) target = $region32
        $region31: #{tpu_custom_call.1} parent=27 // pred_region
          %217 = dma.done %s209, 128
        $region32: #{tpu_custom_call.1} parent=27 // pred_fallthru
          _
        %s218 = sand.u32 %s77, 1
        %s219 = scalar_lea.sflag [#allocation6], %s218
        %s220 = sand.u32 %s77, 1
        %s221 = smul.addr %s220, 8
        %s222 = scalar_lea.vmem [#allocation5], %s221
        // Predicated region
        $region33: #{tpu_custom_call.1} parent=27 // pred_check
          %p223 = pneg %p90
        $region34: #{tpu_custom_call.1} parent=27 // pred_check_branch
          %225 = sbr.rel (%p223) target = $region36
        $region35: #{tpu_custom_call.1} parent=27 // pred_region
          %227 = dma.done %s219, 128
        $region36: #{tpu_custom_call.1} parent=27 // pred_fallthru
          _
        %s228 = sand.u32 %s49, 1
        %s229 = scalar_lea.sflag [#allocation3], %s228
        %s230 = sand.u32 %s49, 1
        %s231 = smul.addr %s230, 8
        %s232 = scalar_lea.vmem [#allocation2], %s231
        %p233 = pneg %p62
        %p234 = pneg %p59
        %s235 = sand.u32 %s77, 1
        %s236 = scalar_lea.sflag [#allocation6], %s235
        %s237 = sand.u32 %s77, 1
        %s238 = smul.addr %s237, 8
        %s239 = scalar_lea.vmem [#allocation5], %s238
        %p240 = pneg %p90
        %p241 = pneg %p87
        %p242 = pneg %p116
        %p243 = pneg %p113
        %s244 = sand.u32 %s103, 1
        %s245 = scalar_lea.sflag [#allocation4], %s244
        %s246 = sand.u32 %s103, 1
        %s247 = smul.addr %s246, 8
        %s248 = scalar_lea.vmem [#allocation7], %s247
        %p249 = pneg %p142
        %p250 = pneg %p139
        %s251 = sand.u32 %s129, 1
        %s252 = scalar_lea.sflag [#allocation9], %s251
        %s253 = sand.u32 %s129, 1
        %s254 = smul.addr %s253, 8
        %s255 = scalar_lea.vmem [#allocation8], %s254
        %p256 = scmp.eq.s32.totalorder %s32, 0
        // Predicated region
        $region37: #{tpu_custom_call.1} parent=27 // pred_check
          %p257 = pneg %p256
        $region38: #{tpu_custom_call.1} parent=27 // pred_check_branch
          %259 = sbr.rel (%p257) target = $region40
        $region39: #{tpu_custom_call.1} parent=27 // pred_region
          %260 = vst [vmem:[%s248] sm:$0xff] 0.0
          %261 = vst [vmem:[%s255] sm:$0xff] 0.0
        $region40: #{tpu_custom_call.1} parent=27 // pred_fallthru
          _
        %v262 = vld [vmem:[%s212] sm:$0xff]
        %v263 = vxor.u32 %v262, 2147483648
        %v264 = vmul.f32 %v263, 1.442695
        %v265 = vpow.pop %v264
        %v266 = vadd.f32 %v265, 1.0
        %v267 = vrcp.pop %v266
        %v268 = vmul.f32 %v266, %v267
        %v269 = vsub.f32 1.0, %v268
        %v270 = vmul.f32 %v267, %v269
        %v271 = vadd.f32 %v267, %v270
        %vm272 = vweird.f32 %v266
        %vm273 = vweird.f32 %v267
        %vm274 = vmor %vm272, %vm273
        %v275 = vsel %vm274, %v267, %v271
        %v276 = vand.u32 2147483647, %v266
        %vm277 = vcmp.eq.f32.partialorder %v276, 8.507059e+37
        %v278 = vand.u32 %v266, 2147483648
        %v279 = vor.u32 1.1754944e-38, %v278
        %v280 = vsel %vm277, %v279, %v275
        %v281 = vmul.f32 1.0, %v280
        %v282 = vld [vmem:[%s222] sm:$0xff]
        %v283 = vmul.f32 %v281, %v281
        %v284 = vmul.f32 %v282, %v282
        %v285 = vadd.f32 %v283, %v284
        %v286 = vld [vmem:[%s248] sm:$0xff]
        %v287 = vmul.f32 %v281, %v282
        %v288 = vadd.f32 %v287, 0.0
        %v289 = vadd.f32 %v286, %v288
        %290 = vst [vmem:[%s248] sm:$0xff] %v289
        %v291 = vld [vmem:[%s255] sm:$0xff]
        %v292 = vadd.f32 %v285, 0.0
        %v293 = vadd.f32 %v291, %v292
        %294 = vst [vmem:[%s255] sm:$0xff] %v293
        %s295 = sand.u32 %s103, 1
        %s296 = scalar_lea.sflag [#allocation4], %s295
        %s297 = sand.u32 %s103, 1
        %s298 = smul.addr %s297, 8
        %s299 = scalar_lea.vmem [#allocation7], %s298
        %s300 = sand.u32 %s129, 1
        %s301 = scalar_lea.sflag [#allocation9], %s300
        %s302 = sand.u32 %s129, 1
        %s303 = smul.addr %s302, 8
        %s304 = scalar_lea.vmem [#allocation8], %s303
        // Predicated region
        $region41: #{tpu_custom_call.1} parent=27 // pred_check
          %p305 = pneg %p113
        $region42: #{tpu_custom_call.1} parent=27 // pred_check_branch
          %307 = sbr.rel (%p305) target = $region44
        $region43: #{tpu_custom_call.1} parent=27 // pred_region
          %309 = vsyncadd %s296, 0
          %s310 = smul.addr %s31, 8
          %s311 = scalar_lea.hbm %s2, %s310
          %s313 = sshll.u32 %s299, 4
          %s314 = int_to_ptr.vmem [resolvable:$true] %s313
          %s315 = sshll.u32 %s311, 4
          %s316 = int_to_ptr.hbm [resolvable:$true] %s315
          %318 = dma.vmem_to_hbm [thread:$0]  %s314, 128, %s316, %s296
        $region44: #{tpu_custom_call.1} parent=27 // pred_fallthru
          _
        // Predicated region
        $region45: #{tpu_custom_call.1} parent=27 // pred_check
          %p319 = pneg %p139
        $region46: #{tpu_custom_call.1} parent=27 // pred_check_branch
          %321 = sbr.rel (%p319) target = $region48
        $region47: #{tpu_custom_call.1} parent=27 // pred_region
          %323 = vsyncadd %s301, 0
          %s324 = smul.addr %s31, 8
          %s325 = scalar_lea.hbm %s3, %s324
          %s327 = sshll.u32 %s304, 4
          %s328 = int_to_ptr.vmem [resolvable:$true] %s327
          %s329 = sshll.u32 %s325, 4
          %s330 = int_to_ptr.hbm [resolvable:$true] %s329
          %332 = dma.vmem_to_hbm [thread:$0]  %s328, 128, %s330, %s301
        $region48: #{tpu_custom_call.1} parent=27 // pred_fallthru
          _
      $region28: #{tpu_custom_call.1} parent=5 // pred_fallthru
        _
      %p333 = scmp.le.s32.totalorder 2, %s22
      // Predicated region
      $region49: #{tpu_custom_call.1} parent=5 // pred_check
        %p334 = pneg %p333
      $region50: #{tpu_custom_call.1} parent=5 // pred_check_branch
        %336 = sbr.rel (%p334) target = $region52
      $region51: #{tpu_custom_call.1} parent=5 // pred_region
        %s337 = ssub.s32 %s22, 2
        // Predicated region
        $region53: #{tpu_custom_call.1} parent=51 // pred_check
          %p338 = pneg %p119
        $region54: #{tpu_custom_call.1} parent=51 // pred_check_branch
          %340 = sbr.rel (%p338) target = $region56
        $region55: #{tpu_custom_call.1} parent=51 // pred_region
          %s341 = sand.u32 %s104, 1
          %s342 = scalar_lea.sflag [#allocation4], %s341
          %s343 = sand.u32 %s104, 1
          %s344 = smul.addr %s343, 8
          %s345 = scalar_lea.vmem [#allocation7], %s344
          %347 = dma.done %s342, 128
        $region56: #{tpu_custom_call.1} parent=51 // pred_fallthru
          _
        // Predicated region
        $region57: #{tpu_custom_call.1} parent=51 // pred_check
          %p348 = pneg %p145
        $region58: #{tpu_custom_call.1} parent=51 // pred_check_branch
          %350 = sbr.rel (%p348) target = $region60
        $region59: #{tpu_custom_call.1} parent=51 // pred_region
          %s351 = sand.u32 %s130, 1
          %s352 = scalar_lea.sflag [#allocation9], %s351
          %s353 = sand.u32 %s130, 1
          %s354 = smul.addr %s353, 8
          %s355 = scalar_lea.vmem [#allocation8], %s354
          %357 = dma.done %s352, 128
        $region60: #{tpu_custom_call.1} parent=51 // pred_fallthru
          _
      $region52: #{tpu_custom_call.1} parent=5 // pred_fallthru
        _
    $region6: #{tpu_custom_call.1} parent=1 // loop_footer
      %s26 = sadd.s32 1, %s22
    $region7: #{tpu_custom_call.1} parent=1 // loop_footer_branch
      %21 = sbr.rel target = $region3
    $region8: #{tpu_custom_call.1} parent=1 // loop_exit
      _
    %358 = vsyncpa [#allocation3], 1
    %s359 = scalar_lea.sflag [#allocation3], 1
    %360 = vsyncpa %s359, 1
    %361 = vsyncpa [#allocation6], 1
    %s362 = scalar_lea.sflag [#allocation6], 1
    %363 = vsyncpa %s362, 1
    %364 = vsyncpa [#allocation4], 1
    %s365 = scalar_lea.sflag [#allocation4], 1
    %366 = vsyncpa %s365, 1
    %367 = vsyncpa [#allocation9], 1
    %s368 = scalar_lea.sflag [#allocation9], 1
    %369 = vsyncpa %s368, 1

</llo_original>
